<compile_context>
chip_gen: v7x
topology: tpu7x:2x2x1
jax: 0.10.0
libtpu: 0.0.40
codegen_flags: <defaults>
</compile_context>

<pallas_src>
import functools

import numpy as np
import jax
import jax.numpy as jnp
from jax import lax
from jax.experimental import pallas as pl
from jax.experimental.pallas import tpu as pltpu


class InsufficientDataError(Exception):
    pass


D = 128     # feature dimension (lane-aligned)
TND = 8     # direction rows per tile (sublane-aligned)
TNM = 8     # modifier rows per tile  -> 64 pair rows (8 vregs) per tile


def _round_up(n, m):
    return ((n + m - 1) // m) * m


# ---------------- projection prologue: hoisted matmuls ----------------------
def _proj_bias_kernel(x_ref, w_ref, b_ref, o_ref):
    o_ref[...] = (jnp.dot(x_ref[...], w_ref[...],
                          preferred_element_type=jnp.float32) + b_ref[...])


def _proj_kernel(x_ref, w_ref, o_ref):
    o_ref[...] = jnp.dot(x_ref[...], w_ref[...],
                         preferred_element_type=jnp.float32)


def _project(x, w, b=None):
    n, d = x.shape
    vm = pltpu.MemorySpace.VMEM
    if b is not None:
        return pl.pallas_call(
            _proj_bias_kernel,
            out_shape=jax.ShapeDtypeStruct((n, d), jnp.float32),
            in_specs=[pl.BlockSpec(memory_space=vm)] * 3,
            out_specs=pl.BlockSpec(memory_space=vm),
        )(x, w, b)
    return pl.pallas_call(
        _proj_kernel,
        out_shape=jax.ShapeDtypeStruct((n, d), jnp.float32),
        in_specs=[pl.BlockSpec(memory_space=vm)] * 2,
        out_specs=pl.BlockSpec(memory_space=vm),
    )(x, w)


# ---------------- pair-combine kernel (store-bound hot path) ----------------
def _pair_kernel(a_ref, c_ref, o_ref, *, normalized_features):
    # a: (TND, D)   c: (TNM, D)   o: (TND, TNM, D)
    comb = a_ref[...][:, None, :] + c_ref[...][None, :, :]
    if normalized_features:
        sumsq = jnp.sum(comb * comb, axis=-1, keepdims=True)
        # rsqrt(max(s, eps^2)) == 1 / max(sqrt(s), eps), eps = 1e-12 (F.normalize)
        inv = lax.rsqrt(jnp.maximum(sumsq, 1e-24))
        comb = comb * inv
    o_ref[...] = comb.astype(o_ref.dtype)


@functools.partial(jax.jit, static_argnames=("normalized_features", "out_dtype"))
def _combine_pairs_call(x_dir, x_mod, w1, w2, b, *, normalized_features,
                        out_dtype=jnp.float32):
    nd, d = x_dir.shape
    nm, _ = x_mod.shape

    # Hoisted: compute each projection once, not per (i, j) tile.
    a = _project(x_dir, w1, b)      # (nd, D) = x_dir @ W1 + b
    c = _project(x_mod, w2)         # (nm, D) = x_mod @ W2

    grid = (nd // TND, nm // TNM)
    out = pl.pallas_call(
        functools.partial(_pair_kernel, normalized_features=normalized_features),
        out_shape=jax.ShapeDtypeStruct((nd, nm, d), out_dtype),
        grid_spec=pltpu.PrefetchScalarGridSpec(
            num_scalar_prefetch=0,
            grid=grid,
            in_specs=[pl.BlockSpec((TND, d), lambda i, j: (i, 0)),
                      pl.BlockSpec((TNM, d), lambda i, j: (j, 0))],
            out_specs=pl.BlockSpec((TND, TNM, d), lambda i, j: (i, j, 0)),
        ),
        compiler_params=pltpu.CompilerParams(
            dimension_semantics=("parallel", "parallel"),
            vmem_limit_bytes=32 * 1024 * 1024,
        ),
    )(a, c)
    # Contiguous row-major reshape -> lane-dense (nd*nm, D) slab (free under jit).
    return out.reshape(nd * nm, d)


class CombinePairs:
    """JAX/Pallas port of com_hom_emg CombinePairs with a linear combine_fn."""

    def __init__(self, w, b, normalized_features: bool):
        # combine_fn parameters: w (2D, D), b (D,)
        w = jnp.asarray(w, jnp.float32)
        self.w1 = w[:D, :]
        self.w2 = w[D:, :]
        self.b = jnp.asarray(b, jnp.float32).reshape(1, D)
        self.normalized_features = normalized_features

    def __call__(self, x, y):
        # TODO(synk): label-driven boolean gather & pair-label bookkeeping stay on
        # host (dynamic shapes); could move on-device via scalar-prefetched indices.
        x = np.asarray(x, np.float32)
        y = np.asarray(y)
        dir_idx = y[:, 1] == 4
        mod_idx = y[:, 0] == 4
        x_dir = x[dir_idx]
        y_dir = y[dir_idx, 0]
        x_mod = x[mod_idx]
        y_mod = y[mod_idx, 1]
        nd, nm = len(x_dir), len(x_mod)
        if nd * nm <= 1:
            raise InsufficientDataError()

        # Bucket Nd / Nm to multiples of 8: (8,128)-aligned tiles, bounded recompiles.
        nd_p = max(TND, _round_up(nd, TND))
        nm_p = max(TNM, _round_up(nm, TNM))
        xd_p = np.zeros((nd_p, D), np.float32)
        xd_p[:nd] = x_dir
        xm_p = np.zeros((nm_p, D), np.float32)
        xm_p[:nm] = x_mod

        out = _combine_pairs_call(
            jnp.asarray(xd_p), jnp.asarray(xm_p),
            self.w1, self.w2, self.b,
            normalized_features=self.normalized_features,
        )

        # Select the valid pair rows. product(zip(x_dir,...), zip(x_mod,...)) order:
        # outer = dir (row i), inner = mod (row j) -> flat row i*nm_p + j.
        flat_idx = (np.arange(nd)[:, None] * nm_p + np.arange(nm)[None, :]).ravel()
        x_aug = jnp.take(out, jnp.asarray(flat_idx), axis=0)

        y1 = np.repeat(y_dir, nm)
        y2 = np.tile(y_mod, nd)
        y_aug = jnp.stack([jnp.asarray(y1), jnp.asarray(y2)], axis=-1)
        return x_aug, y_aug


if __name__ == "__main__":
    key = jax.random.PRNGKey(0)
    k_x, k_w, k_b = jax.random.split(key, 3)

    N = 12
    x = jax.random.normal(k_x, (N, D), dtype=jnp.float32)

    # Half the rows are pure-direction (mod == 4), half pure-modifier (dir == 4).
    y = np.zeros((N, 2), dtype=np.int32)
    for i in range(N):
        if i % 2 == 0:
            y[i] = (i % 4, 4)   # direction sample, direction class i%4
        else:
            y[i] = (4, i % 4)   # modifier sample, modifier class i%4

    # Deterministic combine_fn parameters (linear: concat(x1,x2) @ W + b).
    w = 0.05 * jax.random.normal(k_w, (2 * D, D), dtype=jnp.float32)
    b = 0.01 * jax.random.normal(k_b, (D,), dtype=jnp.float32)

    module = CombinePairs(w, b, normalized_features=True)
    x_aug, y_aug = module(x, y)
    x_aug = jax.block_until_ready(x_aug)
    y_aug = jax.block_until_ready(y_aug)

    assert x_aug.shape == (6 * 6, D), x_aug.shape
    assert y_aug.shape == (6 * 6, 2), y_aug.shape
    assert bool(jnp.all(jnp.isfinite(x_aug)))
    # normalized rows should have unit L2 norm
    norms = jnp.linalg.norm(x_aug, axis=-1)
    assert bool(jnp.all(jnp.abs(norms - 1.0) < 1e-3))

    # reference check vs plain-JAX math: concat(x1,x2) @ W + b, then L2 normalize
    xd = np.asarray(x)[np.asarray(y)[:, 1] == 4]
    xm = np.asarray(x)[np.asarray(y)[:, 0] == 4]
    x1 = np.repeat(xd, len(xm), axis=0)
    x2 = np.tile(xm, (len(xd), 1))
    ref = np.concatenate([x1, x2], axis=-1) @ np.asarray(w) + np.asarray(b)
    ref = ref / np.maximum(np.linalg.norm(ref, axis=-1, keepdims=True), 1e-12)
    assert np.allclose(np.asarray(x_aug), ref, atol=2e-5), "mismatch vs reference"

    print("KERNEL_OK")
</pallas_src>

<mosaic_0001>
module attributes {stable_mosaic.version = 11 : i64} {
  func.func @_proj_bias_kernel(%arg0: memref<8x128xf32, #tpu.memory_space<vmem>>, %arg1: memref<128x128xf32, #tpu.memory_space<vmem>>, %arg2: memref<1x128xf32, #tpu.memory_space<vmem>>, %arg3: memref<8x128xf32, #tpu.memory_space<vmem>>) attributes {dimension_semantics = [], scalar_prefetch = 0 : i64, scratch_operands = 0 : i64, tpu.core_type = #tpu.core_type<tc>} {
    %c0 = arith.constant 0 : index
    %c0_0 = arith.constant 0 : index
    %0 = vector.load %arg0[%c0, %c0_0] : memref<8x128xf32, #tpu.memory_space<vmem>>, vector<8x128xf32>
    %c0_1 = arith.constant 0 : index
    %c0_2 = arith.constant 0 : index
    %1 = vector.load %arg1[%c0_1, %c0_2] : memref<128x128xf32, #tpu.memory_space<vmem>>, vector<128x128xf32>
    %cst = arith.constant dense<0.000000e+00> : vector<8x128xf32>
    %2 = tpu.matmul %0, %1, %cst {dimension_numbers = #tpu.dot_dimension_numbers<[1], [0], [0], [1], [0, 0, 1, 1], [], []>} : vector<8x128xf32>, vector<128x128xf32>, vector<8x128xf32> -> vector<8x128xf32>
    %c0_3 = arith.constant 0 : index
    %c0_4 = arith.constant 0 : index
    %3 = vector.load %arg2[%c0_3, %c0_4] : memref<1x128xf32, #tpu.memory_space<vmem>>, vector<1x128xf32>
    %4 = vector.broadcast %3 : vector<1x128xf32> to vector<8x128xf32>
    %5 = arith.addf %2, %4 : vector<8x128xf32>
    %c0_5 = arith.constant 0 : index
    %c0_6 = arith.constant 0 : index
    %6 = vector.load %arg3[%c0_5, %c0_6] : memref<8x128xf32, #tpu.memory_space<vmem>>, vector<8x128xf32>
    tpu.vector_store %arg3[%c0_5, %c0_6], %5 {strides = array<i32>} : memref<8x128xf32, #tpu.memory_space<vmem>>, vector<8x128xf32>,
    return
  }
}

module attributes {stable_mosaic.version = 11 : i64} {
  func.func @_pair_kernel(%arg0: i32, %arg1: i32, %arg2: memref<8x128xf32, #tpu.memory_space<vmem>>, %arg3: memref<8x128xf32, #tpu.memory_space<vmem>>, %arg4: memref<8x8x128xf32, #tpu.memory_space<vmem>>) attributes {dimension_semantics = [#tpu.dimension_semantics<parallel>, #tpu.dimension_semantics<parallel>], iteration_bounds = array<i64: 1, 1>, scalar_prefetch = 0 : i64, scratch_operands = 0 : i64, tpu.core_type = #tpu.core_type<tc>, window_params = [{transform_indices = @transform_0, window_bounds = array<i64: 8, 128>}, {transform_indices = @transform_1, window_bounds = array<i64: 8, 128>}, {transform_indices = @transform_2, window_bounds = array<i64: 8, 8, 128>}]} {
    %c0 = arith.constant 0 : index
    %c0_0 = arith.constant 0 : index
    %0 = vector.load %arg2[%c0, %c0_0] : memref<8x128xf32, #tpu.memory_space<vmem>>, vector<8x128xf32>
    %1 = vector.shape_cast %0 : vector<8x128xf32> to vector<8x1x128xf32>
    %c0_1 = arith.constant 0 : index
    %c0_2 = arith.constant 0 : index
    %2 = vector.load %arg3[%c0_1, %c0_2] : memref<8x128xf32, #tpu.memory_space<vmem>>, vector<8x128xf32>
    %3 = vector.shape_cast %2 : vector<8x128xf32> to vector<1x8x128xf32>
    %4 = vector.broadcast %1 : vector<8x1x128xf32> to vector<8x8x128xf32>
    %5 = vector.broadcast %3 : vector<1x8x128xf32> to vector<8x8x128xf32>
    %6 = arith.addf %4, %5 : vector<8x8x128xf32>
    %7 = arith.mulf %6, %6 : vector<8x8x128xf32>
    %cst = arith.constant dense<0.000000e+00> : vector<8x8xf32>
    %8 = vector.multi_reduction <add>, %7, %cst [2] : vector<8x8x128xf32> to vector<8x8xf32>
    %9 = vector.shape_cast %8 : vector<8x8xf32> to vector<8x8x1xf32>
    %cst_3 = arith.constant 1.000000e-24 : f32
    %10 = vector.broadcast %cst_3 : f32 to vector<8x8x1xf32>
    %11 = arith.maximumf %9, %10 : vector<8x8x1xf32>
    %12 = math.rsqrt %11 : vector<8x8x1xf32>
    %13 = vector.broadcast %12 : vector<8x8x1xf32> to vector<8x8x128xf32>
    %14 = arith.mulf %6, %13 : vector<8x8x128xf32>
    %c0_4 = arith.constant 0 : index
    %c0_5 = arith.constant 0 : index
    %c0_6 = arith.constant 0 : index
    %15 = vector.load %arg4[%c0_4, %c0_5, %c0_6] : memref<8x8x128xf32, #tpu.memory_space<vmem>>, vector<8x8x128xf32>
    tpu.vector_store %arg4[%c0_4, %c0_5, %c0_6], %14 {strides = array<i32>} : memref<8x8x128xf32, #tpu.memory_space<vmem>>, vector<8x8x128xf32>,
    return
  }
  func.func @transform_0(%arg0: i32, %arg1: i32) -> (i32, i32) {
    %c0_i32 = arith.constant 0 : i32
    %c0_i32_0 = arith.constant 0 : i32
    return %arg0, %c0_i32 : i32, i32
  }
  func.func @transform_1(%arg0: i32, %arg1: i32) -> (i32, i32) {
    %c0_i32 = arith.constant 0 : i32
    %c0_i32_0 = arith.constant 0 : i32
    return %arg1, %c0_i32 : i32, i32
  }
  func.func @transform_2(%arg0: i32, %arg1: i32) -> (i32, i32, i32) {
    %c0_i32 = arith.constant 0 : i32
    %c0_i32_0 = arith.constant 0 : i32
    return %arg0, %arg1, %c0_i32 : i32, i32, i32
  }
}

module attributes {stable_mosaic.version = 11 : i64} {
  func.func @_proj_kernel(%arg0: memref<8x128xf32, #tpu.memory_space<vmem>>, %arg1: memref<128x128xf32, #tpu.memory_space<vmem>>, %arg2: memref<8x128xf32, #tpu.memory_space<vmem>>) attributes {dimension_semantics = [], scalar_prefetch = 0 : i64, scratch_operands = 0 : i64, tpu.core_type = #tpu.core_type<tc>} {
    %c0 = arith.constant 0 : index
    %c0_0 = arith.constant 0 : index
    %0 = vector.load %arg0[%c0, %c0_0] : memref<8x128xf32, #tpu.memory_space<vmem>>, vector<8x128xf32>
    %c0_1 = arith.constant 0 : index
    %c0_2 = arith.constant 0 : index
    %1 = vector.load %arg1[%c0_1, %c0_2] : memref<128x128xf32, #tpu.memory_space<vmem>>, vector<128x128xf32>
    %cst = arith.constant dense<0.000000e+00> : vector<8x128xf32>
    %2 = tpu.matmul %0, %1, %cst {dimension_numbers = #tpu.dot_dimension_numbers<[1], [0], [0], [1], [0, 0, 1, 1], [], []>} : vector<8x128xf32>, vector<128x128xf32>, vector<8x128xf32> -> vector<8x128xf32>
    %c0_3 = arith.constant 0 : index
    %c0_4 = arith.constant 0 : index
    %3 = vector.load %arg2[%c0_3, %c0_4] : memref<8x128xf32, #tpu.memory_space<vmem>>, vector<8x128xf32>
    tpu.vector_store %arg2[%c0_3, %c0_4], %2 {strides = array<i32>} : memref<8x128xf32, #tpu.memory_space<vmem>>, vector<8x128xf32>,
    return
  }
}

</mosaic_0001>

<llo_original>
// kernel: _combine_pairs_call.5
$region0: #{_combine_pairs_call.5}
  #allocation0 [shape = 'u32[]', space=smem, size = 0x4, offset = 0x4, fixed_abs, tag = 'smem constant byte address 0x4 - core index']
  #allocation1 [shape = 'u32[144,128]{1,0:T(1,128)}', space=vmem, size = 0x12000, scoped, tag = 'internal scratch']
  %s0 = inlined_call_operand.vmem [shape: f32[8,128], index: 0, kind: input, shape index: {}]
  %s1 = inlined_call_operand.vmem [shape: f32[8,128], index: 1, kind: input, shape index: {}]
  %s2 = inlined_call_operand.hbm [shape: f32[8,8,128], index: 2, kind: output, shape index: {}]
  %s3 = sld [smem:[#allocation0]]
  $region18: #{_combine_pairs_call.5} parent=0
    _
  %s5 = ssub.s32 1, %s3
  %s6 = scalar_select 0, %s5, %s3
  $region1: #{_combine_pairs_call.5} parent=0
    #allocation2 [shape = 'u8[32768]{0}', space=vmem, size = 0x8000, scoped, tag = 'output window, operand 0, single buffered']
    #allocation3 [shape = 's32[1]{0}', space=sflag, size = 0x4, scoped, tag = 'scoped memory for _combine_pairs_call.5']
    %7 = vsyncpa [#allocation3], 0
    // Predicated region
    $region2: #{_combine_pairs_call.5} parent=1 // pred_check
      _
    $region3: #{_combine_pairs_call.5} parent=1 // pred_check_branch
      %9 = sbr.rel (0) target = $region5
    $region4: #{_combine_pairs_call.5} parent=1 // pred_region
      _
    $region5: #{_combine_pairs_call.5} parent=1 // pred_fallthru
      _
    // Predicated region
    $region6: #{_combine_pairs_call.5} parent=1 // pred_check
      _
    $region7: #{_combine_pairs_call.5} parent=1 // pred_check_branch
      %11 = sbr.rel (0) target = $region9
    $region8: #{_combine_pairs_call.5} parent=1 // pred_region
      _
    $region9: #{_combine_pairs_call.5} parent=1 // pred_fallthru
      _
    %v12 = vld [vmem:[%s0] sm:$0xff]
    %v14 = vcombine.high %v12, %v12
    %v16 = vunpack.c.l.s4 1966171168
    %v17 = vunpack.c.0.s8 %v16
    %v18 = vlaneseq
    %v19 = vshrl.u32 %v18, 7
    %v20 = vsub.s32 %v17, %v19
    %v21 = vrot.slane %v12, %v20
    %v23 = vunpack.c.l.s4 1966171168
    %v24 = vunpack.c.0.s8 %v23
    %v25 = vlaneseq
    %v26 = vshrl.u32 %v25, 7
    %v27 = vsub.s32 %v24, %v26
    %v28 = vrot.slane %v14, %v27
    %v29 = vcombine.high %v21, %v21
    %v30 = vcombine.high %v28, %v28
    %v32 = vunpack.c.l.s4 1966171168
    %v33 = vunpack.c.0.s8 %v32
    %v34 = vlaneseq
    %v35 = vshrl.u32 %v34, 7
    %v36 = vsub.s32 %v33, %v35
    %v37 = vrot.slane %v21, %v36
    %v39 = vunpack.c.l.s4 1966171168
    %v40 = vunpack.c.0.s8 %v39
    %v41 = vlaneseq
    %v42 = vshrl.u32 %v41, 7
    %v43 = vsub.s32 %v40, %v42
    %v44 = vrot.slane %v28, %v43
    %v46 = vunpack.c.l.s4 1966171168
    %v47 = vunpack.c.0.s8 %v46
    %v48 = vlaneseq
    %v49 = vshrl.u32 %v48, 7
    %v50 = vsub.s32 %v47, %v49
    %v51 = vrot.slane %v29, %v50
    %v53 = vunpack.c.l.s4 1966171168
    %v54 = vunpack.c.0.s8 %v53
    %v55 = vlaneseq
    %v56 = vshrl.u32 %v55, 7
    %v57 = vsub.s32 %v54, %v56
    %v58 = vrot.slane %v30, %v57
    %v59 = vcombine.high %v37, %v37
    %v60 = vcombine.high %v44, %v44
    %v61 = vcombine.high %v51, %v51
    %v62 = vcombine.high %v58, %v58
    %v63 = vld [vmem:[%s1] sm:$0xff]
    %v64 = vlaneseq
    %v65 = vshrl.u32 %v64, 7
    %v66 = vsub.s32 0, %v65
    %v67 = vrot.slane %v37, %v66
    %v68 = vlaneseq
    %v69 = vshrl.u32 %v68, 7
    %v70 = vsub.s32 0, %v69
    %v71 = vrot.slane %v51, %v70
    %v72 = vlaneseq
    %v73 = vshrl.u32 %v72, 7
    %v74 = vsub.s32 0, %v73
    %v75 = vrot.slane %v59, %v74
    %v76 = vlaneseq
    %v77 = vshrl.u32 %v76, 7
    %v78 = vsub.s32 0, %v77
    %v79 = vrot.slane %v61, %v78
    %v80 = vlaneseq
    %v81 = vshrl.u32 %v80, 7
    %v82 = vsub.s32 0, %v81
    %v83 = vrot.slane %v44, %v82
    %v84 = vlaneseq
    %v85 = vshrl.u32 %v84, 7
    %v86 = vsub.s32 0, %v85
    %v87 = vrot.slane %v58, %v86
    %v88 = vlaneseq
    %v89 = vshrl.u32 %v88, 7
    %v90 = vsub.s32 0, %v89
    %v91 = vrot.slane %v60, %v90
    %v92 = vlaneseq
    %v93 = vshrl.u32 %v92, 7
    %v94 = vsub.s32 0, %v93
    %v95 = vrot.slane %v62, %v94
    %v104 = vadd.f32 %v67, %v63
    %v105 = vadd.f32 %v71, %v63
    %v106 = vadd.f32 %v75, %v63
    %v107 = vadd.f32 %v79, %v63
    %v108 = vadd.f32 %v83, %v63
    %v109 = vadd.f32 %v87, %v63
    %v110 = vadd.f32 %v91, %v63
    %v111 = vadd.f32 %v95, %v63
    %v112 = vmul.f32 %v104, %v104
    %v113 = vmul.f32 %v105, %v105
    %v114 = vmul.f32 %v106, %v106
    %v115 = vmul.f32 %v107, %v107
    %v116 = vmul.f32 %v108, %v108
    %v117 = vmul.f32 %v109, %v109
    %v118 = vmul.f32 %v110, %v110
    %v119 = vmul.f32 %v111, %v111
    %120 = vadd.xlane.f32.xlu0 %v112
    %v121 = vpop.xlane.xlu0 %120
    %122 = vadd.xlane.f32.xlu0 %v113
    %v123 = vpop.xlane.xlu0 %122
    %124 = vadd.xlane.f32.xlu0 %v114
    %v125 = vpop.xlane.xlu0 %124
    %126 = vadd.xlane.f32.xlu0 %v115
    %v127 = vpop.xlane.xlu0 %126
    %128 = vadd.xlane.f32.xlu0 %v116
    %v129 = vpop.xlane.xlu0 %128
    %130 = vadd.xlane.f32.xlu0 %v117
    %v131 = vpop.xlane.xlu0 %130
    %132 = vadd.xlane.f32.xlu0 %v118
    %v133 = vpop.xlane.xlu0 %132
    %134 = vadd.xlane.f32.xlu0 %v119
    %v135 = vpop.xlane.xlu0 %134
    %v136 = vmax.f32 %v121, 1e-24
    %v137 = vmax.f32 %v123, 1e-24
    %v138 = vmax.f32 %v125, 1e-24
    %v139 = vmax.f32 %v127, 1e-24
    %v140 = vmax.f32 %v129, 1e-24
    %v141 = vmax.f32 %v131, 1e-24
    %v142 = vmax.f32 %v133, 1e-24
    %v143 = vmax.f32 %v135, 1e-24
    %v144 = vrsqrt.pop %v136
    %v145 = vrsqrt.pop %v137
    %v146 = vrsqrt.pop %v138
    %v147 = vrsqrt.pop %v139
    %v148 = vrsqrt.pop %v140
    %v149 = vrsqrt.pop %v141
    %v150 = vrsqrt.pop %v142
    %v151 = vrsqrt.pop %v143
    %v152 = vmul.f32 %v104, %v144
    %v153 = vmul.f32 %v105, %v145
    %v154 = vmul.f32 %v106, %v146
    %v155 = vmul.f32 %v107, %v147
    %v156 = vmul.f32 %v108, %v148
    %v157 = vmul.f32 %v109, %v149
    %v158 = vmul.f32 %v110, %v150
    %v159 = vmul.f32 %v111, %v151
    %160 = vst [vmem:[#allocation2] sm:$0xff] %v152
    %161 = vst [vmem:[#allocation2 + $0x8] sm:$0xff] %v153
    %162 = vst [vmem:[#allocation2 + $0x10] sm:$0xff] %v154
    %163 = vst [vmem:[#allocation2 + $0x18] sm:$0xff] %v155
    %164 = vst [vmem:[#allocation2 + $0x20] sm:$0xff] %v156
    %165 = vst [vmem:[#allocation2 + $0x28] sm:$0xff] %v157
    %166 = vst [vmem:[#allocation2 + $0x30] sm:$0xff] %v158
    %167 = vst [vmem:[#allocation2 + $0x38] sm:$0xff] %v159
    // Predicated region
    $region10: #{_combine_pairs_call.5} parent=1 // pred_check
      _
    $region11: #{_combine_pairs_call.5} parent=1 // pred_check_branch
      %169 = sbr.rel (0) target = $region13
    $region12: #{_combine_pairs_call.5} parent=1 // pred_region
      %s171 = ssub.s32 1024, 1024
      %172 = vsyncadd [#allocation3], %s171
      %s173 = sshll.u32 [#allocation2], 4
      %s174 = int_to_ptr.vmem [resolvable:$true] %s173
      %179 = dma.vmem_to_hbm [thread:$0]  %s174, 1024, %s2, [#allocation3], 128, 128, 8
    $region13: #{_combine_pairs_call.5} parent=1 // pred_fallthru
      _
    // Predicated region
    $region14: #{_combine_pairs_call.5} parent=1 // pred_check
      _
    $region15: #{_combine_pairs_call.5} parent=1 // pred_check_branch
      %181 = sbr.rel (0) target = $region17
    $region16: #{_combine_pairs_call.5} parent=1 // pred_region
      %182 = dma.done [#allocation3], 1024
    $region17: #{_combine_pairs_call.5} parent=1 // pred_fallthru
      _
    %183 = vsyncpa [#allocation3], 1

// kernel: _combine_pairs_call.3
$region0: #{_combine_pairs_call.3}
  #allocation0 [shape = 'u32[]', space=smem, size = 0x4, offset = 0x4, fixed_abs, tag = 'smem constant byte address 0x4 - core index']
  #allocation1 [shape = 'u32[144,128]{1,0:T(1,128)}', space=vmem, size = 0x12000, scoped, tag = 'internal scratch']
  %s0 = inlined_call_operand.hbm [shape: f32[8,128], index: 0, kind: input, shape index: {}]
  %s1 = inlined_call_operand.hbm [shape: f32[128,128], index: 1, kind: input, shape index: {}]
  %s2 = inlined_call_operand.vmem [shape: f32[1,128], index: 2, kind: input, shape index: {}]
  %s3 = inlined_call_operand.vmem [shape: f32[8,128], index: 3, kind: output, shape index: {}]
  %s4 = sld [smem:[#allocation0]]
  $region30: #{_combine_pairs_call.3} parent=0
    _
  %s6 = ssub.s32 1, %s4
  %s7 = scalar_select 0, %s6, %s4
  $region1: #{_combine_pairs_call.3} parent=0
    #allocation2 [shape = 'u8[4096]{0}', space=vmem, size = 0x1000, scoped, tag = 'input window, operand 0, single buffered']
    #allocation3 [shape = 's32[1]{0}', space=sflag, size = 0x4, scoped, tag = 'scoped memory for _combine_pairs_call.3']
    #allocation4 [shape = 'u8[65536]{0}', space=vmem, size = 0x10000, scoped, tag = 'input window, operand 1, single buffered']
    #allocation5 [shape = 's32[1]{0}', space=sflag, size = 0x4, scoped, tag = 'scoped memory for _combine_pairs_call.3']
    %8 = vsyncpa [#allocation3], 0
    %9 = vsyncpa [#allocation5], 0
    // Predicated region
    $region2: #{_combine_pairs_call.3} parent=1 // pred_check
      _
    $region3: #{_combine_pairs_call.3} parent=1 // pred_check_branch
      %11 = sbr.rel (0) target = $region5
    $region4: #{_combine_pairs_call.3} parent=1 // pred_region
      %s13 = ssub.s32 128, 128
      %14 = vsyncadd [#allocation3], %s13
      %s16 = sshll.u32 [#allocation2], 4
      %s17 = int_to_ptr.vmem [resolvable:$true] %s16
      %19 = dma.hbm_to_vmem [thread:$0]  %s0, 128, %s17, [#allocation3]
    $region5: #{_combine_pairs_call.3} parent=1 // pred_fallthru
      _
    // Predicated region
    $region6: #{_combine_pairs_call.3} parent=1 // pred_check
      _
    $region7: #{_combine_pairs_call.3} parent=1 // pred_check_branch
      %21 = sbr.rel (0) target = $region9
    $region8: #{_combine_pairs_call.3} parent=1 // pred_region
      %s23 = ssub.s32 2048, 2048
      %24 = vsyncadd [#allocation5], %s23
      %s25 = sshll.u32 [#allocation4], 4
      %s26 = int_to_ptr.vmem [resolvable:$true] %s25
      %31 = dma.hbm_to_vmem [thread:$0]  %s1, 2048, %s26, [#allocation5], 128, 128, 8
    $region9: #{_combine_pairs_call.3} parent=1 // pred_fallthru
      _
    // Predicated region
    $region10: #{_combine_pairs_call.3} parent=1 // pred_check
      _
    $region11: #{_combine_pairs_call.3} parent=1 // pred_check_branch
      %33 = sbr.rel (0) target = $region13
    $region12: #{_combine_pairs_call.3} parent=1 // pred_region
      _
    $region13: #{_combine_pairs_call.3} parent=1 // pred_fallthru
      _
    // Predicated region
    $region14: #{_combine_pairs_call.3} parent=1 // pred_check
      _
    $region15: #{_combine_pairs_call.3} parent=1 // pred_check_branch
      %35 = sbr.rel (0) target = $region17
    $region16: #{_combine_pairs_call.3} parent=1 // pred_region
      %36 = dma.done [#allocation3], 128
    $region17: #{_combine_pairs_call.3} parent=1 // pred_fallthru
      _
    // Predicated region
    $region18: #{_combine_pairs_call.3} parent=1 // pred_check
      _
    $region19: #{_combine_pairs_call.3} parent=1 // pred_check_branch
      %38 = sbr.rel (0) target = $region21
    $region20: #{_combine_pairs_call.3} parent=1 // pred_region
      %39 = dma.done [#allocation5], 2048
    $region21: #{_combine_pairs_call.3} parent=1 // pred_fallthru
      _
    %v40 = vld [vmem:[#allocation2] sm:$0xff]
    %v41 = vld [vmem:[#allocation4] sm:$0xff]
    %v42 = vld [vmem:[#allocation4 + $0x8] sm:$0xff]
    %v43 = vld [vmem:[#allocation4 + $0x10] sm:$0xff]
    %v44 = vld [vmem:[#allocation4 + $0x18] sm:$0xff]
    %v45 = vld [vmem:[#allocation4 + $0x20] sm:$0xff]
    %v46 = vld [vmem:[#allocation4 + $0x28] sm:$0xff]
    %v47 = vld [vmem:[#allocation4 + $0x30] sm:$0xff]
    %v48 = vld [vmem:[#allocation4 + $0x38] sm:$0xff]
    %v49 = vld [vmem:[#allocation4 + $0x40] sm:$0xff]
    %v50 = vld [vmem:[#allocation4 + $0x48] sm:$0xff]
    %v51 = vld [vmem:[#allocation4 + $0x50] sm:$0xff]
    %v52 = vld [vmem:[#allocation4 + $0x58] sm:$0xff]
    %v53 = vld [vmem:[#allocation4 + $0x60] sm:$0xff]
    %v54 = vld [vmem:[#allocation4 + $0x68] sm:$0xff]
    %v55 = vld [vmem:[#allocation4 + $0x70] sm:$0xff]
    %v56 = vld [vmem:[#allocation4 + $0x78] sm:$0xff]
    %v57 = vld [vmem:[%s2] sm:$0x1]
    %v59 = vlaneseq
    %v60 = vshrl.u32 %v59, 7
    %v61 = vsub.s32 0, %v60
    %v62 = vrot.slane %v57, %v61
    %64 = vmatprep.subr.mxu0 0.0
    %65 = vmatpush1.msra.mxu0 %v41
    %66 = vmatprep.subr.mxu0 0.0
    %67 = vmatpush1.msra.mxu0 %v42
    %68 = vmatprep.subr.mxu0 0.0
    %69 = vmatpush1.msra.mxu0 %v43
    %70 = vmatprep.subr.mxu0 0.0
    %71 = vmatpush1.msra.mxu0 %v44
    %72 = vmatprep.subr.mxu0 0.0
    %73 = vmatpush1.msra.mxu0 %v45
    %74 = vmatprep.subr.mxu0 0.0
    %75 = vmatpush1.msra.mxu0 %v46
    %76 = vmatprep.subr.mxu0 0.0
    %77 = vmatpush1.msra.mxu0 %v47
    %78 = vmatprep.subr.mxu0 0.0
    %79 = vmatpush1.msra.mxu0 %v48
    %80 = vmatprep.subr.mxu0 0.0
    %81 = vmatpush1.msra.mxu0 %v49
    %82 = vmatprep.subr.mxu0 0.0
    %83 = vmatpush1.msra.mxu0 %v50
    %84 = vmatprep.subr.mxu0 0.0
    %85 = vmatpush1.msra.mxu0 %v51
    %86 = vmatprep.subr.mxu0 0.0
    %87 = vmatpush1.msra.mxu0 %v52
    %88 = vmatprep.subr.mxu0 0.0
    %89 = vmatpush1.msra.mxu0 %v53
    %90 = vmatprep.subr.mxu0 0.0
    %91 = vmatpush1.msra.mxu0 %v54
    %92 = vmatprep.subr.mxu0 0.0
    %93 = vmatpush1.msra.mxu0 %v55
    %94 = vmatprep.subr.mxu0 0.0
    %95 = vmatpush1.msra.mxu0 %v56
    %96 = vmatprep.subr.mxu0 0.0
    %97 = vmatpush1.msra.mxu0 0.0
    %98 = vmatprep.subr.mxu0 0.0
    %99 = vmatpush1.msra.mxu0 0.0
    %100 = vmatprep.subr.mxu0 0.0
    %101 = vmatpush1.msra.mxu0 0.0
    %102 = vmatprep.subr.mxu0 0.0
    %103 = vmatpush1.msra.mxu0 0.0
    %104 = vmatprep.subr.mxu0 0.0
    %105 = vmatpush1.msra.mxu0 0.0
    %106 = vmatprep.subr.mxu0 0.0
    %107 = vmatpush1.msra.mxu0 0.0
    %108 = vmatprep.subr.mxu0 0.0
    %109 = vmatpush1.msra.mxu0 0.0
    %110 = vmatprep.subr.mxu0 0.0
    %111 = vmatpush1.msra.mxu0 0.0
    %112 = vmatprep.subr.mxu0 0.0
    %113 = vmatpush1.msra.mxu0 0.0
    %114 = vmatprep.subr.mxu0 0.0
    %115 = vmatpush1.msra.mxu0 0.0
    %116 = vmatprep.subr.mxu0 0.0
    %117 = vmatpush1.msra.mxu0 0.0
    %118 = vmatprep.subr.mxu0 0.0
    %119 = vmatpush1.msra.mxu0 0.0
    %120 = vmatprep.subr.mxu0 0.0
    %121 = vmatpush1.msra.mxu0 0.0
    %122 = vmatprep.subr.mxu0 0.0
    %123 = vmatpush1.msra.mxu0 0.0
    %124 = vmatprep.subr.mxu0 0.0
    %125 = vmatpush1.msra.mxu0 0.0
    %126 = vmatprep.subr.mxu0 0.0
    %127 = vmatpush1.msra.mxu0 0.0
    %128 = vmatprep.mubr.f32.mxu0 0.0
    %129 = vmatmul.mubr.f32.gmra.mrb[0].mxu0 %v40
    %v130 = vpop.f32.mrb[0].mxu0
    %v131 = vadd.f32 %v62, %v130
    %v132 = vpop.f32.mrb[0].mxu0
    %133 = vdwg.mxu0
    %134 = vst [vmem:[%s3] sm:$0xff] %v131
    // Predicated region
    $region22: #{_combine_pairs_call.3} parent=1 // pred_check
      _
    $region23: #{_combine_pairs_call.3} parent=1 // pred_check_branch
      %136 = sbr.rel (0) target = $region25
    $region24: #{_combine_pairs_call.3} parent=1 // pred_region
      _
    $region25: #{_combine_pairs_call.3} parent=1 // pred_fallthru
      _
    // Predicated region
    $region26: #{_combine_pairs_call.3} parent=1 // pred_check
      _
    $region27: #{_combine_pairs_call.3} parent=1 // pred_check_branch
      %138 = sbr.rel (0) target = $region29
    $region28: #{_combine_pairs_call.3} parent=1 // pred_region
      _
    $region29: #{_combine_pairs_call.3} parent=1 // pred_fallthru
      _
    %139 = vsyncpa [#allocation3], 1
    %140 = vsyncpa [#allocation5], 1

// kernel: _combine_pairs_call.4
$region0: #{_combine_pairs_call.4}
  #allocation0 [shape = 'u32[]', space=smem, size = 0x4, offset = 0x4, fixed_abs, tag = 'smem constant byte address 0x4 - core index']
  #allocation1 [shape = 'u32[144,128]{1,0:T(1,128)}', space=vmem, size = 0x12000, scoped, tag = 'internal scratch']
  %s0 = inlined_call_operand.vmem [shape: f32[8,128], index: 0, kind: input, shape index: {}]
  %s1 = inlined_call_operand.vmem [shape: f32[128,128], index: 1, kind: input, shape index: {}]
  %s2 = inlined_call_operand.vmem [shape: f32[8,128], index: 2, kind: output, shape index: {}]
  %s3 = sld [smem:[#allocation0]]
  $region18: #{_combine_pairs_call.4} parent=0
    _
  %s5 = ssub.s32 1, %s3
  %s6 = scalar_select 0, %s5, %s3
  // Predicated region
  $region2: #{_combine_pairs_call.4} parent=0 // pred_check
    _
  $region3: #{_combine_pairs_call.4} parent=0 // pred_check_branch
    %8 = sbr.rel (0) target = $region5
  $region4: #{_combine_pairs_call.4} parent=0 // pred_region
    _
  $region5: #{_combine_pairs_call.4} parent=0 // pred_fallthru
    _
  // Predicated region
  $region6: #{_combine_pairs_call.4} parent=0 // pred_check
    _
  $region7: #{_combine_pairs_call.4} parent=0 // pred_check_branch
    %10 = sbr.rel (0) target = $region9
  $region8: #{_combine_pairs_call.4} parent=0 // pred_region
    _
  $region9: #{_combine_pairs_call.4} parent=0 // pred_fallthru
    _
  %v11 = vld [vmem:[%s0] sm:$0xff]
  %v12 = vld [vmem:[%s1] sm:$0xff]
  %v13 = vld [vmem:[%s1 + $0x8] sm:$0xff]
  %v14 = vld [vmem:[%s1 + $0x10] sm:$0xff]
  %v15 = vld [vmem:[%s1 + $0x18] sm:$0xff]
  %v16 = vld [vmem:[%s1 + $0x20] sm:$0xff]
  %v17 = vld [vmem:[%s1 + $0x28] sm:$0xff]
  %v18 = vld [vmem:[%s1 + $0x30] sm:$0xff]
  %v19 = vld [vmem:[%s1 + $0x38] sm:$0xff]
  %v20 = vld [vmem:[%s1 + $0x40] sm:$0xff]
  %v21 = vld [vmem:[%s1 + $0x48] sm:$0xff]
  %v22 = vld [vmem:[%s1 + $0x50] sm:$0xff]
  %v23 = vld [vmem:[%s1 + $0x58] sm:$0xff]
  %v24 = vld [vmem:[%s1 + $0x60] sm:$0xff]
  %v25 = vld [vmem:[%s1 + $0x68] sm:$0xff]
  %v26 = vld [vmem:[%s1 + $0x70] sm:$0xff]
  %v27 = vld [vmem:[%s1 + $0x78] sm:$0xff]
  %28 = vmatprep.subr.mxu0 0.0
  %29 = vmatpush1.msra.mxu0 %v12
  %30 = vmatprep.subr.mxu0 0.0
  %31 = vmatpush1.msra.mxu0 %v13
  %32 = vmatprep.subr.mxu0 0.0
  %33 = vmatpush1.msra.mxu0 %v14
  %34 = vmatprep.subr.mxu0 0.0
  %35 = vmatpush1.msra.mxu0 %v15
  %36 = vmatprep.subr.mxu0 0.0
  %37 = vmatpush1.msra.mxu0 %v16
  %38 = vmatprep.subr.mxu0 0.0
  %39 = vmatpush1.msra.mxu0 %v17
  %40 = vmatprep.subr.mxu0 0.0
  %41 = vmatpush1.msra.mxu0 %v18
  %42 = vmatprep.subr.mxu0 0.0
  %43 = vmatpush1.msra.mxu0 %v19
  %44 = vmatprep.subr.mxu0 0.0
  %45 = vmatpush1.msra.mxu0 %v20
  %46 = vmatprep.subr.mxu0 0.0
  %47 = vmatpush1.msra.mxu0 %v21
  %48 = vmatprep.subr.mxu0 0.0
  %49 = vmatpush1.msra.mxu0 %v22
  %50 = vmatprep.subr.mxu0 0.0
  %51 = vmatpush1.msra.mxu0 %v23
  %52 = vmatprep.subr.mxu0 0.0
  %53 = vmatpush1.msra.mxu0 %v24
  %54 = vmatprep.subr.mxu0 0.0
  %55 = vmatpush1.msra.mxu0 %v25
  %56 = vmatprep.subr.mxu0 0.0
  %57 = vmatpush1.msra.mxu0 %v26
  %58 = vmatprep.subr.mxu0 0.0
  %59 = vmatpush1.msra.mxu0 %v27
  %60 = vmatprep.subr.mxu0 0.0
  %61 = vmatpush1.msra.mxu0 0.0
  %62 = vmatprep.subr.mxu0 0.0
  %63 = vmatpush1.msra.mxu0 0.0
  %64 = vmatprep.subr.mxu0 0.0
  %65 = vmatpush1.msra.mxu0 0.0
  %66 = vmatprep.subr.mxu0 0.0
  %67 = vmatpush1.msra.mxu0 0.0
  %68 = vmatprep.subr.mxu0 0.0
  %69 = vmatpush1.msra.mxu0 0.0
  %70 = vmatprep.subr.mxu0 0.0
  %71 = vmatpush1.msra.mxu0 0.0
  %72 = vmatprep.subr.mxu0 0.0
  %73 = vmatpush1.msra.mxu0 0.0
  %74 = vmatprep.subr.mxu0 0.0
  %75 = vmatpush1.msra.mxu0 0.0
  %76 = vmatprep.subr.mxu0 0.0
  %77 = vmatpush1.msra.mxu0 0.0
  %78 = vmatprep.subr.mxu0 0.0
  %79 = vmatpush1.msra.mxu0 0.0
  %80 = vmatprep.subr.mxu0 0.0
  %81 = vmatpush1.msra.mxu0 0.0
  %82 = vmatprep.subr.mxu0 0.0
  %83 = vmatpush1.msra.mxu0 0.0
  %84 = vmatprep.subr.mxu0 0.0
  %85 = vmatpush1.msra.mxu0 0.0
  %86 = vmatprep.subr.mxu0 0.0
  %87 = vmatpush1.msra.mxu0 0.0
  %88 = vmatprep.subr.mxu0 0.0
  %89 = vmatpush1.msra.mxu0 0.0
  %90 = vmatprep.subr.mxu0 0.0
  %91 = vmatpush1.msra.mxu0 0.0
  %92 = vmatprep.mubr.f32.mxu0 0.0
  %93 = vmatmul.mubr.f32.gmra.mrb[0].mxu0 %v11
  %v94 = vpop.f32.mrb[0].mxu0
  %v95 = vadd.f32 0.0, %v94
  %v96 = vpop.f32.mrb[0].mxu0
  %97 = vdwg.mxu0
  %98 = vst [vmem:[%s2] sm:$0xff] %v95
  // Predicated region
  $region10: #{_combine_pairs_call.4} parent=0 // pred_check
    _
  $region11: #{_combine_pairs_call.4} parent=0 // pred_check_branch
    %100 = sbr.rel (0) target = $region13
  $region12: #{_combine_pairs_call.4} parent=0 // pred_region
    _
  $region13: #{_combine_pairs_call.4} parent=0 // pred_fallthru
    _
  // Predicated region
  $region14: #{_combine_pairs_call.4} parent=0 // pred_check
    _
  $region15: #{_combine_pairs_call.4} parent=0 // pred_check_branch
    %102 = sbr.rel (0) target = $region17
  $region16: #{_combine_pairs_call.4} parent=0 // pred_region
    _
  $region17: #{_combine_pairs_call.4} parent=0 // pred_fallthru
    _

</llo_original>
